<compile_context>
chip_gen: v5e
topology: v5e:2x2
jax: 0.10.0
libtpu: 0.0.40
codegen_flags: <defaults>
</compile_context>

<pallas_src>
from functools import partial

import jax
import jax.numpy as jnp
from jax.experimental import pallas as pl
from jax.experimental.pallas import tpu as pltpu


def _residual_affine_kernel(x_ref, wb_ref, o_ref):
    """out = fn(x) + x, with fn(x) = x*w + b folded to x*(w+1) + b.

    x_ref  : (TR, TC) input tile                       (VMEM)
    wb_ref : (TR, 2)  f32 params: [:, 0] = w+1, [:, 1] = b
    o_ref  : (TR, TC) output tile
    """
    wb = wb_ref[...]                      # (TR, 2) float32
    w1 = wb[:, 0:1]                       # (TR, 1)
    b = wb[:, 1:2]                        # (TR, 1)
    x = x_ref[...].astype(jnp.float32)
    o_ref[...] = (x * w1 + b).astype(o_ref.dtype)


def _round_up(x, m):
    return ((x + m - 1) // m) * m


def _round_down(x, m):
    return (x // m) * m


def _chip_info():
    """(has_two_tensorcores, vmem_limit_bytes, target_x_tile_bytes)."""
    try:
        kind = jax.devices()[0].device_kind.lower()
    except Exception:  # pragma: no cover - defensive
        kind = ""
    two_tc = "v7" in kind                         # v7x: 2 TCs, 64 MiB VMEM/TC
    vmem_limit = (48 if two_tc else 64) * 1024 * 1024
    target_tile_bytes = (8 if two_tc else 4) << 20
    return two_tc, vmem_limit, target_tile_bytes


def _choose_tiles(rows, cols, dtype, two_tc, target_tile_bytes):
    """Pick (tr, tc) for a cdiv grid; tiles need not divide the extents."""
    itemsize = jnp.dtype(dtype).itemsize
    # Minimum sublane tile: 8 (f32), 16 (bf16), 32 (int8/fp8).
    min_sub = max(8, 32 // max(1, itemsize))
    LANE = 128
    LANE_CAP = 8192        # cap lane tile so the row tile stays reasonably deep
    ROW_CAP = 8192         # bounds the (tr, 2)->(tr, 128) padded param block

    # Column (lane) tile: large multiple of 128 -> unmasked vst on all interior
    # tiles; only the last partial block (if any) is masked by Pallas.
    if cols <= LANE:
        tc = cols                                   # full extent is always legal
    else:
        tc = min(_round_down(cols, LANE), LANE_CAP)

    # Row (sublane) tile under the per-x-tile VMEM budget.
    row_budget = max(min_sub, target_tile_bytes // max(1, tc * itemsize))
    row_cap = min(row_budget, ROW_CAP)
    if rows <= min_sub:
        tr = rows                                   # full extent is always legal
    else:
        tr = max(min_sub, _round_down(min(row_cap, rows), min_sub))

    # Megacore balancing: only on 2-TC chips, only if the column grid already
    # has a single step, and aim for an EVEN number of row steps.
    if two_tc and pl.cdiv(cols, tc) == 1 and rows >= 2 * min_sub:
        row_steps = pl.cdiv(rows, tr)
        if row_steps < 2 or row_steps % 2 != 0:
            steps = max(2, row_steps + (row_steps % 2))
            tr = max(min_sub, _round_up(pl.cdiv(rows, steps), min_sub))
            tr = min(tr, _round_down(rows, min_sub))

    return tr, tc


@partial(jax.jit, static_argnames=("donate_x",))
def residual_add(x_nchw, weight, bias, donate_x=False):
    """out = fn(x) + x with fn = per-channel affine; x is NCHW.

    Set donate_x=True only if the caller actually donates x (e.g. via
    jax.jit(donate_argnums=...)); otherwise aliasing forces a defensive copy.
    """
    N, C, H, W = x_nchw.shape
    rows, cols = N * C, H * W
    dtype = x_nchw.dtype

    # Flatten to a 2-D slab: spatial axis on lanes, (n, c) pairs on sublanes.
    x2 = x_nchw.reshape(rows, cols)

    # Fold the residual into the affine: fn(x) + x = x*(w+1) + b.  Keep params
    # in f32 (PyTorch params are fp32); cast only on store inside the kernel.
    w1 = weight.astype(jnp.float32) + 1.0
    b = bias.astype(jnp.float32)
    wb = jnp.stack([w1, b], axis=-1)                # (C, 2)
    wb = jnp.tile(wb[None], (N, 1, 1)).reshape(rows, 2)

    two_tc, vmem_limit, target_tile_bytes = _chip_info()
    tr, tc = _choose_tiles(rows, cols, dtype, two_tc, target_tile_bytes)
    grid = (pl.cdiv(rows, tr), pl.cdiv(cols, tc))   # column axis innermost

    out2 = pl.pallas_call(
        _residual_affine_kernel,
        out_shape=jax.ShapeDtypeStruct((rows, cols), dtype),
        grid_spec=pltpu.PrefetchScalarGridSpec(
            num_scalar_prefetch=0,
            grid=grid,
            in_specs=[
                pl.BlockSpec((tr, tc), lambda i, j: (i, j)),
                # Same block index for every j step -> params DMA'd only when
                # the row tile changes (innermost axis is the column axis).
                pl.BlockSpec((tr, 2), lambda i, j: (i, 0)),
            ],
            out_specs=pl.BlockSpec((tr, tc), lambda i, j: (i, j)),
        ),
        input_output_aliases={0: 0} if donate_x else {},
        compiler_params=pltpu.CompilerParams(
            dimension_semantics=("parallel", "parallel"),
            vmem_limit_bytes=vmem_limit,
        ),
    )(x2, wb)

    return out2.reshape(N, C, H, W)


if __name__ == "__main__":
    # Small deterministic example: batch=2, channels=4, spatial=16x16 (NCHW).
    N, C, H, W = 2, 4, 16, 16
    key = jax.random.PRNGKey(0)
    x = jax.random.normal(key, (N, C, H, W), dtype=jnp.float32)

    # Deterministic parameters for the wrapped fn (per-channel affine).
    weight = 0.5 + 0.1 * jnp.arange(C, dtype=jnp.float32)   # (C,)
    bias = 0.01 * jnp.arange(C, dtype=jnp.float32)          # (C,)

    # Reference (plain JAX): fn(x) + x.
    ref = x * weight.reshape(1, C, 1, 1) + bias.reshape(1, C, 1, 1) + x

    out = residual_add(x, weight, bias)
    out = jax.block_until_ready(out)

    assert out.shape == x.shape and out.dtype == x.dtype
    assert jnp.allclose(out, ref, atol=1e-5, rtol=1e-5)

    print("KERNEL_OK")
</pallas_src>

<mosaic_0001>
module attributes {stable_mosaic.version = 11 : i64} {
  func.func @_residual_affine_kernel(%arg0: i32, %arg1: i32, %arg2: memref<8x256xf32, #tpu.memory_space<vmem>>, %arg3: memref<8x2xf32, #tpu.memory_space<vmem>>, %arg4: memref<8x256xf32, #tpu.memory_space<vmem>>) attributes {dimension_semantics = [#tpu.dimension_semantics<parallel>, #tpu.dimension_semantics<parallel>], iteration_bounds = array<i64: 1, 1>, scalar_prefetch = 0 : i64, scratch_operands = 0 : i64, tpu.core_type = #tpu.core_type<tc>, window_params = [{transform_indices = @transform_0, window_bounds = array<i64: 8, 256>}, {transform_indices = @transform_1, window_bounds = array<i64: 8, 2>}, {transform_indices = @transform_2, window_bounds = array<i64: 8, 256>}]} {
    %c0 = arith.constant 0 : index
    %c0_0 = arith.constant 0 : index
    %0 = vector.load %arg3[%c0, %c0_0] : memref<8x2xf32, #tpu.memory_space<vmem>>, vector<8x2xf32>
    %1 = vector.extract_strided_slice %0 {offsets = [0, 0], sizes = [8, 1], strides = [1, 1]} : vector<8x2xf32> to vector<8x1xf32>
    %2 = vector.extract_strided_slice %0 {offsets = [0, 1], sizes = [8, 1], strides = [1, 1]} : vector<8x2xf32> to vector<8x1xf32>
    %c0_1 = arith.constant 0 : index
    %c0_2 = arith.constant 0 : index
    %3 = vector.load %arg2[%c0_1, %c0_2] : memref<8x256xf32, #tpu.memory_space<vmem>>, vector<8x256xf32>
    %4 = vector.broadcast %1 : vector<8x1xf32> to vector<8x256xf32>
    %5 = arith.mulf %3, %4 : vector<8x256xf32>
    %6 = vector.broadcast %2 : vector<8x1xf32> to vector<8x256xf32>
    %7 = arith.addf %5, %6 : vector<8x256xf32>
    %c0_3 = arith.constant 0 : index
    %c0_4 = arith.constant 0 : index
    %8 = vector.load %arg4[%c0_3, %c0_4] : memref<8x256xf32, #tpu.memory_space<vmem>>, vector<8x256xf32>
    tpu.vector_store %arg4[%c0_3, %c0_4], %7 {strides = array<i32>} : memref<8x256xf32, #tpu.memory_space<vmem>>, vector<8x256xf32>,
    return
  }
  func.func @transform_0(%arg0: i32, %arg1: i32) -> (i32, i32) {
    %c0_i32 = arith.constant 0 : i32
    return %arg0, %arg1 : i32, i32
  }
  func.func @transform_1(%arg0: i32, %arg1: i32) -> (i32, i32) {
    %c0_i32 = arith.constant 0 : i32
    %c0_i32_0 = arith.constant 0 : i32
    return %arg0, %c0_i32 : i32, i32
  }
  func.func @transform_2(%arg0: i32, %arg1: i32) -> (i32, i32) {
    %c0_i32 = arith.constant 0 : i32
    return %arg0, %arg1 : i32, i32
  }
}

</mosaic_0001>

<llo_original>
// kernel: residual_add.1
$region0: #{residual_add.1}
  #allocation0 [shape = 'u32[]', space=smem, size = 0x4, offset = 0x4, fixed_abs, tag = 'smem constant byte address 0x4 - core index']
  #allocation1 [shape = 'u32[72,128]{1,0:T(1,128)}', space=vmem, size = 0x9000, scoped, tag = 'internal scratch']
  %s0 = inlined_call_operand.vmem [shape: f32[8,256], index: 0, kind: input, shape index: {}]
  %s1 = inlined_call_operand.vmem [shape: f32[8,2], index: 1, kind: input, shape index: {}]
  %s2 = inlined_call_operand.vmem [shape: f32[8,256], index: 2, kind: output, shape index: {}]
  %s3 = sld [smem:[#allocation0]]
  $region18: #{residual_add.1} parent=0
    _
  %s5 = ssub.s32 1, %s3
  %s6 = scalar_select 0, %s5, %s3
  // Predicated region
  $region2: #{residual_add.1} parent=0 // pred_check
    _
  $region3: #{residual_add.1} parent=0 // pred_check_branch
    %8 = sbr.rel (0) target = $region5
  $region4: #{residual_add.1} parent=0 // pred_region
    _
  $region5: #{residual_add.1} parent=0 // pred_fallthru
    _
  // Predicated region
  $region6: #{residual_add.1} parent=0 // pred_check
    _
  $region7: #{residual_add.1} parent=0 // pred_check_branch
    %10 = sbr.rel (0) target = $region9
  $region8: #{residual_add.1} parent=0 // pred_region
    _
  $region9: #{residual_add.1} parent=0 // pred_fallthru
    _
  %v11 = vld [vmem:[%s1] sm:$0xff]
  %v12 = vld [vmem:[%s0] sm:$0xff]
  %v13 = vld [vmem:[%s0 + $0x8] sm:$0xff]
  %15 = vset.pattern.permute.xlu0 0
  %16 = vperm.xlu0 %15, %v11
  %v17 = vpop.permute.xlu0 %16
  %v19 = vmul.f32 %v12, %v17
  %v20 = vmul.f32 %v13, %v17
  %21 = vset.pattern.permute.xlu0 1
  %22 = vperm.xlu0 %21, %v11
  %v23 = vpop.permute.xlu0 %22
  %v25 = vadd.f32 %v19, %v23
  %v26 = vadd.f32 %v20, %v23
  %27 = vst [vmem:[%s2] sm:$0xff] %v25
  %28 = vst [vmem:[%s2 + $0x8] sm:$0xff] %v26
  // Predicated region
  $region10: #{residual_add.1} parent=0 // pred_check
    _
  $region11: #{residual_add.1} parent=0 // pred_check_branch
    %30 = sbr.rel (0) target = $region13
  $region12: #{residual_add.1} parent=0 // pred_region
    _
  $region13: #{residual_add.1} parent=0 // pred_fallthru
    _
  // Predicated region
  $region14: #{residual_add.1} parent=0 // pred_check
    _
  $region15: #{residual_add.1} parent=0 // pred_check_branch
    %32 = sbr.rel (0) target = $region17
  $region16: #{residual_add.1} parent=0 // pred_region
    _
  $region17: #{residual_add.1} parent=0 // pred_fallthru
    _

</llo_original>
